<compile_context>
chip_gen: v7x
topology: tpu7x:2x2x1
jax: 0.10.0
libtpu: 0.0.40
codegen_flags: <defaults>
</compile_context>

<pallas_src>
import functools

import jax
import jax.numpy as jnp
from jax.experimental import pallas as pl
from jax.experimental.pallas import tpu as pltpu

MAX_TILE_B = 4096  # rows per grid step; (4096,3) f32 tile is ~2 MiB of padded VMEM,
                   # so double-buffered in+out stays well under every generation's limit.


def _round_up(x, m):
    return (x + m - 1) // m * m


def _fused_affine_kernel(x_ref, w_ref, b_ref, o_ref):
    # x: (tile_b, 3)  w: (1, 3) fused weight row  b: (1, 1)
    # Pure VPU/XLU: elementwise mul, 3-wide lane reduce, bias add.
    o_ref[...] = (
        jnp.sum(x_ref[...] * w_ref[...], axis=-1, keepdims=True) + b_ref[...]
    )


def prepare_params(w1, b1, w2, b2):
    """One-time prep: fuse the two linear layers (exact — no nonlinearity between them).

    w1: (in, hid) = fc1.weight.T   b1: (hid,) = fc1.bias
    w2: (hid, out) = fc2.weight.T  b2: (out,) = fc2.bias
    Returns (w_row (1, in), b (1, 1)).  SimpleNet has out_features == 1.
    """
    w_fused = w1.astype(jnp.float32) @ w2.astype(jnp.float32)          # (in, 1)
    b_fused = b1.astype(jnp.float32) @ w2.astype(jnp.float32) + b2     # (1,)
    return w_fused.T, b_fused.reshape(1, 1)


@jax.jit
def simple_net_pallas(x, w_row, b_scalar):
    """x: (B, 3) f32. Returns (B, 1) f32, identical to SimpleNet.forward."""
    x = x.astype(jnp.float32)
    B, in_f = x.shape

    if B <= 8:
        # Single block equal to the full array: one grid step, no padding, no slack.
        tile_b = B
    else:
        # Keep >=2 grid steps so v7x's two TensorCores both stream batch tiles,
        # but cap the tile so VMEM stays tiny on all generations.
        tile_b = min(MAX_TILE_B, _round_up(pl.cdiv(B, 2), 8))
    grid = pl.cdiv(B, tile_b)

    # Advisory cost so XLA doesn't treat the custom call as expensive.
    cost = pl.CostEstimate(
        flops=2 * B * in_f,
        transcendentals=0,
        bytes_accessed=(x.size + B + w_row.size + b_scalar.size) * 4,
    )

    return pl.pallas_call(
        _fused_affine_kernel,
        out_shape=jax.ShapeDtypeStruct((B, 1), jnp.float32),
        grid=(grid,),
        in_specs=[
            pl.BlockSpec((tile_b, in_f), lambda i: (i, 0)),  # x tile marches over batch
            pl.BlockSpec((1, in_f), lambda i: (0, 0)),       # fused weight stays resident
            pl.BlockSpec((1, 1), lambda i: (0, 0)),          # fused bias stays resident
        ],
        out_specs=pl.BlockSpec((tile_b, 1), lambda i: (i, 0)),
        compiler_params=pltpu.CompilerParams(
            dimension_semantics=("parallel",),  # batch tiles split across TCs on v7x
        ),
        cost_estimate=cost,
    )(x, w_row, b_scalar)


if __name__ == "__main__":
    key = jax.random.PRNGKey(0)

    # Deterministic parameters matching nn.init.constant_(..., 0.5).
    # PyTorch stores Linear weight as (out, in); we keep the transposed (in, out).
    w1 = jnp.full((3, 3), 0.5, jnp.float32)   # fc1.weight.T
    b1 = jnp.full((3,), 0.5, jnp.float32)     # fc1.bias
    w2 = jnp.full((3, 1), 0.5, jnp.float32)   # fc2.weight.T
    b2 = jnp.full((1,), 0.5, jnp.float32)     # fc2.bias

    # Hoisted, one-time layer fusion.
    w_row, b_sc = prepare_params(w1, b1, w2, b2)

    def ref(x):
        return (x @ w1 + b1) @ w2 + b2

    # Small batch (module's intended usage): single block, single grid step.
    x_small = jax.random.normal(key, (2, 3), dtype=jnp.float32)
    y_small = simple_net_pallas(x_small, w_row, b_sc)
    jax.block_until_ready(y_small)
    assert y_small.shape == (2, 1)
    assert jnp.allclose(y_small, ref(x_small), atol=1e-5), (y_small, ref(x_small))

    # Larger batch exercises multiple grid steps + ragged tail masking.
    x_big = jax.random.normal(jax.random.PRNGKey(1), (1000, 3), dtype=jnp.float32)
    y_big = simple_net_pallas(x_big, w_row, b_sc)
    jax.block_until_ready(y_big)
    assert y_big.shape == (1000, 1)
    assert jnp.allclose(y_big, ref(x_big), atol=1e-4)

    print("KERNEL_OK")
</pallas_src>

<mosaic_0001>
module attributes {stable_mosaic.version = 11 : i64} {
  func.func @_fused_affine_kernel(%arg0: i32, %arg1: memref<2x3xf32, #tpu.memory_space<vmem>>, %arg2: memref<1x3xf32, #tpu.memory_space<vmem>>, %arg3: memref<1x1xf32, #tpu.memory_space<vmem>>, %arg4: memref<2x1xf32, #tpu.memory_space<vmem>>) attributes {dimension_semantics = [#tpu.dimension_semantics<parallel>], iteration_bounds = array<i64: 1>, scalar_prefetch = 0 : i64, scratch_operands = 0 : i64, tpu.core_type = #tpu.core_type<tc>, window_params = [{transform_indices = @transform_0, window_bounds = array<i64: 2, 3>}, {pipeline_mode = #tpu.pipeline_mode<synchronous>, transform_indices = @transform_1, window_bounds = array<i64: 1, 3>}, {pipeline_mode = #tpu.pipeline_mode<synchronous>, transform_indices = @transform_2, window_bounds = array<i64: 1, 1>}, {transform_indices = @transform_3, window_bounds = array<i64: 2, 1>}]} {
    %c0 = arith.constant 0 : index
    %c0_0 = arith.constant 0 : index
    %0 = vector.load %arg1[%c0, %c0_0] : memref<2x3xf32, #tpu.memory_space<vmem>>, vector<2x3xf32>
    %c0_1 = arith.constant 0 : index
    %c0_2 = arith.constant 0 : index
    %1 = vector.load %arg2[%c0_1, %c0_2] : memref<1x3xf32, #tpu.memory_space<vmem>>, vector<1x3xf32>
    %2 = vector.broadcast %1 : vector<1x3xf32> to vector<2x3xf32>
    %3 = arith.mulf %0, %2 : vector<2x3xf32>
    %cst = arith.constant dense<0.000000e+00> : vector<2xf32>
    %4 = vector.multi_reduction <add>, %3, %cst [1] : vector<2x3xf32> to vector<2xf32>
    %5 = vector.shape_cast %4 : vector<2xf32> to vector<2x1xf32>
    %c0_3 = arith.constant 0 : index
    %c0_4 = arith.constant 0 : index
    %6 = vector.load %arg3[%c0_3, %c0_4] : memref<1x1xf32, #tpu.memory_space<vmem>>, vector<1x1xf32>
    %7 = vector.broadcast %6 : vector<1x1xf32> to vector<2x1xf32>
    %8 = arith.addf %5, %7 : vector<2x1xf32>
    %c0_5 = arith.constant 0 : index
    %c0_6 = arith.constant 0 : index
    %9 = vector.load %arg4[%c0_5, %c0_6] : memref<2x1xf32, #tpu.memory_space<vmem>>, vector<2x1xf32>
    tpu.vector_store %arg4[%c0_5, %c0_6], %8 {strides = array<i32>} : memref<2x1xf32, #tpu.memory_space<vmem>>, vector<2x1xf32>,
    return
  }
  func.func @transform_0(%arg0: i32) -> (i32, i32) {
    %c0_i32 = arith.constant 0 : i32
    %c0_i32_0 = arith.constant 0 : i32
    return %arg0, %c0_i32 : i32, i32
  }
  func.func @transform_1(%arg0: i32) -> (i32, i32) {
    %c0_i32 = arith.constant 0 : i32
    %c0_i32_0 = arith.constant 0 : i32
    %c0_i32_1 = arith.constant 0 : i32
    return %c0_i32, %c0_i32_0 : i32, i32
  }
  func.func @transform_2(%arg0: i32) -> (i32, i32) {
    %c0_i32 = arith.constant 0 : i32
    %c0_i32_0 = arith.constant 0 : i32
    %c0_i32_1 = arith.constant 0 : i32
    return %c0_i32, %c0_i32_0 : i32, i32
  }
  func.func @transform_3(%arg0: i32) -> (i32, i32) {
    %c0_i32 = arith.constant 0 : i32
    %c0_i32_0 = arith.constant 0 : i32
    return %arg0, %c0_i32 : i32, i32
  }
}

</mosaic_0001>

<llo_original>
// kernel: simple_net_pallas.1
$region0: #{simple_net_pallas.1}
  #allocation0 [shape = 'u32[]', space=smem, size = 0x4, offset = 0x4, fixed_abs, tag = 'smem constant byte address 0x4 - core index']
  #allocation1 [shape = 'u32[144,128]{1,0:T(1,128)}', space=vmem, size = 0x12000, scoped, tag = 'internal scratch']
  #allocation2 [shape = 'f32[1,1]{1,0:T(1,128)S(1)}', space=vmem, size = 0x200, scoped, tag = 'scoped memory for simple_net_pallas.1']
  %s0 = inlined_call_operand.vmem [shape: f32[2,3], index: 0, kind: input, shape index: {}]
  %s1 = inlined_call_operand.vmem [shape: f32[1,3], index: 1, kind: input, shape index: {}]
  %s2 = inlined_call_operand.<no memory space> [shape: f32[1,1], index: 2, kind: input, shape index: {}]
  %s3 = inlined_call_operand.vmem [shape: f32[2,1], index: 3, kind: output, shape index: {}]
  %s4 = sld [smem:[#allocation0]]
  $region22: #{simple_net_pallas.1} parent=0
    _
  %s6 = ssub.s32 1, %s4
  %s7 = scalar_select 0, %s6, %s4
  %v8 = vstv %s2
  %9 = vst [vmem:[#allocation2] sm:$0x1] %v8
  // Predicated region
  $region2: #{simple_net_pallas.1} parent=0 // pred_check
    _
  $region3: #{simple_net_pallas.1} parent=0 // pred_check_branch
    %11 = sbr.rel (0) target = $region5
  $region4: #{simple_net_pallas.1} parent=0 // pred_region
    _
  $region5: #{simple_net_pallas.1} parent=0 // pred_fallthru
    _
  // Predicated region
  $region6: #{simple_net_pallas.1} parent=0 // pred_check
    _
  $region7: #{simple_net_pallas.1} parent=0 // pred_check_branch
    %13 = sbr.rel (0) target = $region9
  $region8: #{simple_net_pallas.1} parent=0 // pred_region
    _
  $region9: #{simple_net_pallas.1} parent=0 // pred_fallthru
    _
  // Predicated region
  $region10: #{simple_net_pallas.1} parent=0 // pred_check
    _
  $region11: #{simple_net_pallas.1} parent=0 // pred_check_branch
    %15 = sbr.rel (0) target = $region13
  $region12: #{simple_net_pallas.1} parent=0 // pred_region
    _
  $region13: #{simple_net_pallas.1} parent=0 // pred_fallthru
    _
  %v16 = vld [vmem:[%s0] sm:$0x3]
  %v17 = vld [vmem:[%s1] sm:$0x1]
  %v19 = vlaneseq
  %v20 = vshrl.u32 %v19, 7
  %v21 = vsub.s32 0, %v20
  %v22 = vrot.slane %v17, %v21
  %v24 = vmul.f32 %v16, %v22
  %vm25 = vcmask 17408
  %v26 = vsel %vm25, %v24, 0.0
  %27 = vadd.xlane.f32.xlu0 %v26
  %v28 = vpop.xlane.xlu0 %27
  %v29 = vld [vmem:[#allocation2] sm:$0x1]
  %v31 = vlaneseq
  %v32 = vshrl.u32 %v31, 7
  %v33 = vsub.s32 0, %v32
  %v34 = vrot.slane %v29, %v33
  %v36 = vadd.f32 %v28, %v34
  %vm37 = vcmask 1024
  %38 = vst.msk [vmem:[%s3] sm:$0x3] %vm37, %v36
  // Predicated region
  $region14: #{simple_net_pallas.1} parent=0 // pred_check
    _
  $region15: #{simple_net_pallas.1} parent=0 // pred_check_branch
    %40 = sbr.rel (0) target = $region17
  $region16: #{simple_net_pallas.1} parent=0 // pred_region
    _
  $region17: #{simple_net_pallas.1} parent=0 // pred_fallthru
    _
  // Predicated region
  $region18: #{simple_net_pallas.1} parent=0 // pred_check
    _
  $region19: #{simple_net_pallas.1} parent=0 // pred_check_branch
    %42 = sbr.rel (0) target = $region21
  $region20: #{simple_net_pallas.1} parent=0 // pred_region
    _
  $region21: #{simple_net_pallas.1} parent=0 // pred_fallthru
    _

</llo_original>
